<compile_context>
chip_gen: v7x
topology: tpu7x:2x2x1
jax: 0.10.0
libtpu: 0.0.40
codegen_flags: <defaults>
</compile_context>

<pallas_src>
import functools

import jax
import jax.numpy as jnp
from jax.experimental import pallas as pl
from jax.experimental.pallas import tpu as pltpu


def _seqquery_kernel(x_ref, c_ref, w2_ref, aw_ref, ab_ref, o_ref):
    # x_ref : [1, tm, H]   sess_embed rows (f32)
    # c_ref : [1, 1, H] or [1, tm, H]   precomputed query@W1^T + b1 + b2 (f32)
    # w2_ref: [H, H]       W2^T (f32 or bf16)
    # aw_ref: [1, H]       alpha weight (f32)
    # ab_ref: [1, 1]       alpha bias (f32)
    x = x_ref[0]                                    # [tm, H] f32
    c = c_ref[0]                                    # [1 or tm, H] f32

    # W_2(sess_embed): single MXU matmul, f32 accumulation.
    h = jnp.dot(x.astype(w2_ref.dtype), w2_ref[...],
                preferred_element_type=jnp.float32)
    h = h + c                                       # hoisted query branch + biases
    h = jax.nn.sigmoid(h)                           # EUP

    # alpha(h): Linear(H -> 1) as a lane reduction (XLU) instead of N=1 matmul.
    w = jnp.sum(h * aw_ref[...], axis=-1, keepdims=True) + ab_ref[0, 0]  # [tm, 1]

    o_ref[0] = (w * x).astype(o_ref.dtype)


def _pick_tile(L, tile_m):
    """Largest multiple-of-8 divisor of L that is <= tile_m (else L itself)."""
    if L <= tile_m:
        return L
    for t in range(min(tile_m, L) // 8 * 8, 0, -8):
        if L % t == 0:
            return t
    return L


@functools.partial(jax.jit, static_argnames=("tile_m", "use_bf16_matmul"))
def seqquery_multi(sess_embed, query, params, tile_m=512, use_bf16_matmul=True):
    """sess_embed: [B, L, H]; query: [B, H], [B, 1, H] or [B, L, H]."""
    B, L, H = sess_embed.shape
    w1t, b1, w2t, b2, aw, ab = params  # [H,H],[1,H],[H,H],[1,H],[1,H],[1,1]

    q = query
    if q.ndim == 2:
        q = q[:, None, :]

    # Hoist query @ W1^T + (b1 + b2): tiny XLA matmul, computed once per batch
    # row instead of once per (batch, seq) row inside the kernel.
    c = (q @ w1t + (b1 + b2)).astype(jnp.float32)   # [B, Lq, H], Lq in {1, L}
    Lq = c.shape[1]

    tm = _pick_tile(L, tile_m)
    n_seq = L // tm
    M = B * L

    w2k = w2t.astype(jnp.bfloat16) if use_bf16_matmul else w2t

    # --- BlockSpecs -------------------------------------------------------
    row_spec = pl.BlockSpec((1, tm, H), lambda b, j: (b, j, 0))
    if Lq == 1:
        c_spec = pl.BlockSpec((1, 1, H), lambda b, j: (b, 0, 0))
    else:
        c_spec = pl.BlockSpec((1, tm, H), lambda b, j: (b, j, 0))
    full = lambda shape: pl.BlockSpec(shape, lambda b, j: (0,) * len(shape))

    # --- compiler hints ---------------------------------------------------
    bpe_w = int(jnp.zeros((), w2k.dtype).dtype.itemsize)
    est_vmem = (2 * tm * H * 4            # x, double-buffered
                + 2 * tm * H * 4          # out, double-buffered
                + 2 * min(tm, Lq) * H * 4 # c
                + 2 * H * H * bpe_w       # W2 (pipelined, constant index)
                + 2 * H * 4 + 4096)
    vmem_limit = int(min(max(2 * est_vmem, 4 << 20), 64 << 20))

    cost = pl.CostEstimate(
        flops=int(2 * M * H * H + 6 * M * H),
        transcendentals=int(M * H),
        bytes_accessed=int((2 * M * H + B * Lq * H + 2 * H + 1) * 4
                           + H * H * bpe_w),
    )

    out = pl.pallas_call(
        _seqquery_kernel,
        out_shape=jax.ShapeDtypeStruct((B, L, H), sess_embed.dtype),
        grid_spec=pltpu.PrefetchScalarGridSpec(
            num_scalar_prefetch=0,
            grid=(B, n_seq),
            in_specs=[
                row_spec,          # sess_embed rows
                c_spec,            # hoisted query branch + biases
                full((H, H)),      # W2^T
                full((1, H)),      # alpha weight
                full((1, 1)),      # alpha bias
            ],
            out_specs=row_spec,
        ),
        compiler_params=pltpu.CompilerParams(
            dimension_semantics=("parallel", "parallel"),
            vmem_limit_bytes=vmem_limit),
        cost_estimate=cost,
    )(sess_embed, c, w2k, aw, ab)

    return out


def _xavier_uniform(key, out_dim, in_dim):
    # matches nn.init.xavier_uniform_ for a Linear weight of shape [out, in]
    limit = jnp.sqrt(6.0 / (in_dim + out_dim))
    return jax.random.uniform(key, (out_dim, in_dim), jnp.float32, -limit, limit)


def make_params(key, hidden_size):
    k1, k2, k3, k4, k5, k6 = jax.random.split(key, 6)
    H = hidden_size
    W1 = _xavier_uniform(k1, H, H)             # [out, in]
    W2 = _xavier_uniform(k2, H, H)
    Wa = _xavier_uniform(k3, 1, H)
    # PyTorch Linear default bias init: U(-1/sqrt(in), 1/sqrt(in))
    bb = 1.0 / jnp.sqrt(float(H))
    b1 = jax.random.uniform(k4, (1, H), jnp.float32, -bb, bb)
    b2 = jax.random.uniform(k5, (1, H), jnp.float32, -bb, bb)
    ba = jax.random.uniform(k6, (1, 1), jnp.float32, -bb, bb)
    # kernel consumes transposed weights ([in, out])
    return (W1.T, b1, W2.T, b2, Wa, ba)


def _reference(sess_embed, query, params):
    w1t, b1, w2t, b2, aw, ab = params
    h = jax.nn.sigmoid(query @ w1t + b1 + sess_embed @ w2t + b2)
    weight = jnp.sum(h * aw, axis=-1, keepdims=True) + ab[0, 0]
    return weight * sess_embed


if __name__ == "__main__":
    key = jax.random.PRNGKey(0)
    kp, kx, kq = jax.random.split(key, 3)

    B, L, H = 2, 8, 32
    params = make_params(kp, H)
    sess_embed = jax.random.normal(kx, (B, L, H), jnp.float32)
    query = jax.random.normal(kq, (B, 1, H), jnp.float32)

    ref = _reference(sess_embed, query, params)

    # Exact-parity path (f32 MXU inputs).
    out_f32 = jax.block_until_ready(
        seqquery_multi(sess_embed, query, params, use_bf16_matmul=False))
    assert out_f32.shape == (B, L, H)
    assert jnp.allclose(out_f32, ref, atol=1e-5, rtol=1e-5), "f32 mismatch vs reference"

    # Fast path (bf16 MXU inputs, f32 accumulation) - looser tolerance.
    out_bf16 = jax.block_until_ready(
        seqquery_multi(sess_embed, query, params, use_bf16_matmul=True))
    assert out_bf16.shape == (B, L, H)
    assert jnp.allclose(out_bf16, ref, atol=2e-2, rtol=2e-2), "bf16 mismatch vs reference"

    print("KERNEL_OK")
</pallas_src>

<mosaic_0001>
module attributes {stable_mosaic.version = 11 : i64} {
  func.func @_seqquery_kernel(%arg0: i32, %arg1: i32, %arg2: memref<1x8x32xf32, #tpu.memory_space<vmem>>, %arg3: memref<1x1x32xf32, #tpu.memory_space<vmem>>, %arg4: memref<32x32xf32, #tpu.memory_space<vmem>>, %arg5: memref<1x32xf32, #tpu.memory_space<vmem>>, %arg6: memref<1x1xf32, #tpu.memory_space<vmem>>, %arg7: memref<1x8x32xf32, #tpu.memory_space<vmem>>) attributes {dimension_semantics = [#tpu.dimension_semantics<parallel>, #tpu.dimension_semantics<parallel>], iteration_bounds = array<i64: 2, 1>, scalar_prefetch = 0 : i64, scratch_operands = 0 : i64, tpu.core_type = #tpu.core_type<tc>, window_params = [{transform_indices = @transform_0, window_bounds = array<i64: 1, 8, 32>}, {transform_indices = @transform_1, window_bounds = array<i64: 1, 1, 32>}, {pipeline_mode = #tpu.pipeline_mode<synchronous>, transform_indices = @transform_2, window_bounds = array<i64: 32, 32>}, {pipeline_mode = #tpu.pipeline_mode<synchronous>, transform_indices = @transform_3, window_bounds = array<i64: 1, 32>}, {pipeline_mode = #tpu.pipeline_mode<synchronous>, transform_indices = @transform_4, window_bounds = array<i64: 1, 1>}, {transform_indices = @transform_5, window_bounds = array<i64: 1, 8, 32>}]} {
    %c0 = arith.constant 0 : index
    %c0_0 = arith.constant 0 : index
    %c0_1 = arith.constant 0 : index
    %0 = vector.load %arg2[%c0, %c0_0, %c0_1] : memref<1x8x32xf32, #tpu.memory_space<vmem>>, vector<1x8x32xf32>
    %1 = vector.shape_cast %0 : vector<1x8x32xf32> to vector<8x32xf32>
    %c0_2 = arith.constant 0 : index
    %c0_3 = arith.constant 0 : index
    %c0_4 = arith.constant 0 : index
    %2 = vector.load %arg3[%c0_2, %c0_3, %c0_4] : memref<1x1x32xf32, #tpu.memory_space<vmem>>, vector<1x1x32xf32>
    %3 = vector.shape_cast %2 : vector<1x1x32xf32> to vector<1x32xf32>
    %c0_5 = arith.constant 0 : index
    %c0_6 = arith.constant 0 : index
    %4 = vector.load %arg4[%c0_5, %c0_6] : memref<32x32xf32, #tpu.memory_space<vmem>>, vector<32x32xf32>
    %cst = arith.constant dense<0.000000e+00> : vector<8x32xf32>
    %5 = tpu.matmul %1, %4, %cst {dimension_numbers = #tpu.dot_dimension_numbers<[1], [0], [0], [1], [0, 0, 1, 1], [], []>} : vector<8x32xf32>, vector<32x32xf32>, vector<8x32xf32> -> vector<8x32xf32>
    %6 = vector.broadcast %3 : vector<1x32xf32> to vector<8x32xf32>
    %7 = arith.addf %5, %6 : vector<8x32xf32>
    %8 = arith.negf %7 : vector<8x32xf32>
    %9 = math.exp %8 : vector<8x32xf32>
    %cst_7 = arith.constant 1.000000e+00 : f32
    %10 = vector.broadcast %cst_7 : f32 to vector<8x32xf32>
    %11 = arith.addf %10, %9 : vector<8x32xf32>
    %12 = arith.divf %10, %11 : vector<8x32xf32>
    %c0_8 = arith.constant 0 : index
    %c0_9 = arith.constant 0 : index
    %13 = vector.load %arg5[%c0_8, %c0_9] : memref<1x32xf32, #tpu.memory_space<vmem>>, vector<1x32xf32>
    %14 = vector.broadcast %13 : vector<1x32xf32> to vector<8x32xf32>
    %15 = arith.mulf %12, %14 : vector<8x32xf32>
    %cst_10 = arith.constant dense<0.000000e+00> : vector<8xf32>
    %16 = vector.multi_reduction <add>, %15, %cst_10 [1] : vector<8x32xf32> to vector<8xf32>
    %17 = vector.shape_cast %16 : vector<8xf32> to vector<8x1xf32>
    %c0_11 = arith.constant 0 : index
    %c0_12 = arith.constant 0 : index
    %18 = vector.load %arg6[%c0_11, %c0_12] : memref<1x1xf32, #tpu.memory_space<vmem>>, vector<1x1xf32>
    %19 = vector.extract %18[0, 0] : f32 from vector<1x1xf32>
    %20 = vector.broadcast %19 : f32 to vector<8x1xf32>
    %21 = arith.addf %17, %20 : vector<8x1xf32>
    %22 = vector.broadcast %21 : vector<8x1xf32> to vector<8x32xf32>
    %23 = arith.mulf %22, %1 : vector<8x32xf32>
    %c0_13 = arith.constant 0 : index
    %c0_14 = arith.constant 0 : index
    %c0_15 = arith.constant 0 : index
    %24 = vector.load %arg7[%c0_13, %c0_14, %c0_15] : memref<1x8x32xf32, #tpu.memory_space<vmem>>, vector<1x8x32xf32>
    %25 = vector.shape_cast %24 : vector<1x8x32xf32> to vector<8x32xf32>
    %26 = vector.shape_cast %23 : vector<8x32xf32> to vector<1x8x32xf32>
    tpu.vector_store %arg7[%c0_13, %c0_14, %c0_15], %26 {strides = array<i32>} : memref<1x8x32xf32, #tpu.memory_space<vmem>>, vector<1x8x32xf32>,
    return
  }
  func.func @transform_0(%arg0: i32, %arg1: i32) -> (i32, i32, i32) {
    %c0_i32 = arith.constant 0 : i32
    %c0_i32_0 = arith.constant 0 : i32
    return %arg0, %arg1, %c0_i32 : i32, i32, i32
  }
  func.func @transform_1(%arg0: i32, %arg1: i32) -> (i32, i32, i32) {
    %c0_i32 = arith.constant 0 : i32
    %c0_i32_0 = arith.constant 0 : i32
    %c0_i32_1 = arith.constant 0 : i32
    return %arg0, %c0_i32, %c0_i32_0 : i32, i32, i32
  }
  func.func @transform_2(%arg0: i32, %arg1: i32) -> (i32, i32) {
    %c0_i32 = arith.constant 0 : i32
    %c0_i32_0 = arith.constant 0 : i32
    %c0_i32_1 = arith.constant 0 : i32
    return %c0_i32, %c0_i32_0 : i32, i32
  }
  func.func @transform_3(%arg0: i32, %arg1: i32) -> (i32, i32) {
    %c0_i32 = arith.constant 0 : i32
    %c0_i32_0 = arith.constant 0 : i32
    %c0_i32_1 = arith.constant 0 : i32
    return %c0_i32, %c0_i32_0 : i32, i32
  }
  func.func @transform_4(%arg0: i32, %arg1: i32) -> (i32, i32) {
    %c0_i32 = arith.constant 0 : i32
    %c0_i32_0 = arith.constant 0 : i32
    %c0_i32_1 = arith.constant 0 : i32
    return %c0_i32, %c0_i32_0 : i32, i32
  }
  func.func @transform_5(%arg0: i32, %arg1: i32) -> (i32, i32, i32) {
    %c0_i32 = arith.constant 0 : i32
    %c0_i32_0 = arith.constant 0 : i32
    return %arg0, %arg1, %c0_i32 : i32, i32, i32
  }
}

</mosaic_0001>

<llo_original>
// kernel: seqquery_multi.1
$region0: #{seqquery_multi.1}
  #allocation0 [shape = 'u32[]', space=smem, size = 0x4, offset = 0x4, fixed_abs, tag = 'smem constant byte address 0x4 - core index']
  #allocation1 [shape = 'u32[144,128]{1,0:T(1,128)}', space=vmem, size = 0x12000, scoped, tag = 'internal scratch']
  #allocation2 [shape = 'f32[1,1]{1,0:T(1,128)S(1)}', space=vmem, size = 0x200, scoped, tag = 'scoped memory for seqquery_multi.1']
  %s0 = inlined_call_operand.vmem [shape: f32[2,8,32], index: 0, kind: input, shape index: {}]
  %s1 = inlined_call_operand.vmem [shape: f32[2,1,32], index: 1, kind: input, shape index: {}]
  %s2 = inlined_call_operand.vmem [shape: f32[32,32], index: 2, kind: input, shape index: {}]
  %s3 = inlined_call_operand.vmem [shape: f32[1,32], index: 3, kind: input, shape index: {}]
  %s4 = inlined_call_operand.<no memory space> [shape: f32[1,1], index: 4, kind: input, shape index: {}]
  %s5 = inlined_call_operand.hbm [shape: f32[2,8,32], index: 5, kind: output, shape index: {}]
  %s6 = sld [smem:[#allocation0]]
  $region53: #{seqquery_multi.1} parent=0
    _
  %s8 = ssub.s32 1, %s6
  %s9 = scalar_select 0, %s8, %s6
  %v10 = vstv %s4
  %11 = vst [vmem:[#allocation2] sm:$0x1] %v10
  $region1: #{seqquery_multi.1} parent=0
    #allocation3 [shape = 'u8[8192]{0}', space=vmem, size = 0x2000, scoped, tag = 'output window, operand 0']
    #allocation4 [shape = 's32[2]{0}', space=sflag, size = 0x8, scoped, tag = 'scoped memory for seqquery_multi.1']
    %12 = vsyncpa [#allocation4], 0
    %s13 = scalar_lea.sflag [#allocation4], 1
    %14 = vsyncpa %s13, 0
    loop: start=0, step=1, limit=4
    $region2: #{seqquery_multi.1} parent=1 // loop_pre_header
      _
    $region3: #{seqquery_multi.1} parent=1 // loop_header
      %s16 = sphi 0, %s20
      %p17 = scmp.ge.s32.totalorder %s16, 4
      %s23 = sphi 0, %s35
      %s24 = sphi 0, %s31
      %s25 = sphi 0, %s23
      %s26 = sphi 0, %s24
      %s27 = sphi 0, %s25
      %s28 = sphi 0, %s26
      %s40 = sphi 0, %s42
      %s43 = sphi 0, %s40
      %s44 = sphi 0, %s43
      %s60 = sphi 0, %s44
      %s66 = sphi 0, %s68
      %s69 = sphi 0, %s66
      %s70 = sphi 0, %s69
      %s86 = sphi 0, %s70
      %s90 = sphi 0, %s90
      %s92 = sphi 0, %s90
      %s93 = sphi 0, %s92
      %s107 = sphi 0, %s93
      %s111 = sphi 0, %s111
      %s113 = sphi 0, %s111
      %s114 = sphi 0, %s113
      %s128 = sphi 0, %s114
      %s132 = sphi 0, %s132
      %s134 = sphi 0, %s132
      %s135 = sphi 0, %s134
      %s149 = sphi 0, %s135
      %s157 = sphi 0, %s159
      %s160 = sphi 0, %s157
      %s161 = sphi 0, %s160
      %s177 = sphi 0, %s161
    $region4: #{seqquery_multi.1} parent=1 // loop_header_branch
      %19 = sbr.rel (%p17) target = $region8
    $region5: #{seqquery_multi.1} parent=1 // loop_body
      %s21 = ssub.s32 %s16, 1
      %s22 = ssub.s32 %s16, 2
      %s29 = sadd.s32 1, %s24
      %p30 = scmp.ge.s32.totalorder %s29, 1
      %s31 = scalar_select %p30, 0, %s29
      %s32 = sadd.s32 1, %s23
      %s33 = scalar_select %p30, %s32, %s23
      %p34 = scmp.ge.s32.totalorder %s33, 2
      %s35 = scalar_select %p34, 0, %s33
      %s36 = ssub.s32 %s23, %s35
      %s37 = ssub.s32 %s24, %s31
      %s38 = sor.u32 %s36, %s37
      %p39 = scmp.eq.s32.totalorder %s38, 0
      %s41 = sadd.s32 %s40, 1
      %s42 = scalar_select %p39, %s40, %s41
      %p45 = pneg %p39
      %p46 = scmp.eq.s32.totalorder %s16, 1
      %p47 = por %p45, %p46
      %p48 = scmp.ne.s32.totalorder %s40, %s43
      %p49 = scmp.eq.s32.totalorder %s16, 0
      %p50 = por %p48, %p49
      %p51 = scmp.ne.s32.totalorder %s40, %s43
      %p52 = scmp.eq.s32.totalorder %s21, 1
      %p53 = por %p51, %p52
      %p54 = scmp.ne.s32.totalorder %s43, %s44
      %p55 = scmp.eq.s32.totalorder %s21, 0
      %p56 = por %p54, %p55
      %p57 = scmp.ne.s32.totalorder %s43, %s44
      %p58 = scmp.eq.s32.totalorder %s22, 1
      %p59 = por %p57, %p58
      %p61 = scmp.ne.s32.totalorder %s44, %s60
      %p62 = scmp.eq.s32.totalorder %s22, 0
      %p63 = por %p61, %p62
      %s64 = ssub.s32 %s23, %s35
      %p65 = scmp.eq.s32.totalorder %s64, 0
      %s67 = sadd.s32 %s66, 1
      %s68 = scalar_select %p65, %s66, %s67
      %p71 = pneg %p65
      %p72 = scmp.eq.s32.totalorder %s16, 1
      %p73 = por %p71, %p72
      %p74 = scmp.ne.s32.totalorder %s66, %s69
      %p75 = scmp.eq.s32.totalorder %s16, 0
      %p76 = por %p74, %p75
      %p77 = scmp.ne.s32.totalorder %s66, %s69
      %p78 = scmp.eq.s32.totalorder %s21, 1
      %p79 = por %p77, %p78
      %p80 = scmp.ne.s32.totalorder %s69, %s70
      %p81 = scmp.eq.s32.totalorder %s21, 0
      %p82 = por %p80, %p81
      %p83 = scmp.ne.s32.totalorder %s69, %s70
      %p84 = scmp.eq.s32.totalorder %s22, 1
      %p85 = por %p83, %p84
      %p87 = scmp.ne.s32.totalorder %s70, %s86
      %p88 = scmp.eq.s32.totalorder %s22, 0
      %p89 = por %p87, %p88
      %s91 = sadd.s32 %s90, 1
      %p94 = scmp.eq.s32.totalorder %s16, 1
      %p95 = scmp.ne.s32.totalorder %s90, %s92
      %p96 = scmp.eq.s32.totalorder %s16, 0
      %p97 = por %p95, %p96
      %p98 = scmp.ne.s32.totalorder %s90, %s92
      %p99 = scmp.eq.s32.totalorder %s21, 1
      %p100 = por %p98, %p99
      %p101 = scmp.ne.s32.totalorder %s92, %s93
      %p102 = scmp.eq.s32.totalorder %s21, 0
      %p103 = por %p101, %p102
      %p104 = scmp.ne.s32.totalorder %s92, %s93
      %p105 = scmp.eq.s32.totalorder %s22, 1
      %p106 = por %p104, %p105
      %p108 = scmp.ne.s32.totalorder %s93, %s107
      %p109 = scmp.eq.s32.totalorder %s22, 0
      %p110 = por %p108, %p109
      %s112 = sadd.s32 %s111, 1
      %p115 = scmp.eq.s32.totalorder %s16, 1
      %p116 = scmp.ne.s32.totalorder %s111, %s113
      %p117 = scmp.eq.s32.totalorder %s16, 0
      %p118 = por %p116, %p117
      %p119 = scmp.ne.s32.totalorder %s111, %s113
      %p120 = scmp.eq.s32.totalorder %s21, 1
      %p121 = por %p119, %p120
      %p122 = scmp.ne.s32.totalorder %s113, %s114
      %p123 = scmp.eq.s32.totalorder %s21, 0
      %p124 = por %p122, %p123
      %p125 = scmp.ne.s32.totalorder %s113, %s114
      %p126 = scmp.eq.s32.totalorder %s22, 1
      %p127 = por %p125, %p126
      %p129 = scmp.ne.s32.totalorder %s114, %s128
      %p130 = scmp.eq.s32.totalorder %s22, 0
      %p131 = por %p129, %p130
      %s133 = sadd.s32 %s132, 1
      %p136 = scmp.eq.s32.totalorder %s16, 1
      %p137 = scmp.ne.s32.totalorder %s132, %s134
      %p138 = scmp.eq.s32.totalorder %s16, 0
      %p139 = por %p137, %p138
      %p140 = scmp.ne.s32.totalorder %s132, %s134
      %p141 = scmp.eq.s32.totalorder %s21, 1
      %p142 = por %p140, %p141
      %p143 = scmp.ne.s32.totalorder %s134, %s135
      %p144 = scmp.eq.s32.totalorder %s21, 0
      %p145 = por %p143, %p144
      %p146 = scmp.ne.s32.totalorder %s134, %s135
      %p147 = scmp.eq.s32.totalorder %s22, 1
      %p148 = por %p146, %p147
      %p150 = scmp.ne.s32.totalorder %s135, %s149
      %p151 = scmp.eq.s32.totalorder %s22, 0
      %p152 = por %p150, %p151
      %s153 = ssub.s32 %s23, %s35
      %s154 = ssub.s32 %s24, %s31
      %s155 = sor.u32 %s153, %s154
      %p156 = scmp.eq.s32.totalorder %s155, 0
      %s158 = sadd.s32 %s157, 1
      %s159 = scalar_select %p156, %s157, %s158
      %p162 = pneg %p156
      %p163 = scmp.eq.s32.totalorder %s16, 1
      %p164 = por %p162, %p163
      %p165 = scmp.ne.s32.totalorder %s157, %s160
      %p166 = scmp.eq.s32.totalorder %s16, 0
      %p167 = por %p165, %p166
      %p168 = scmp.ne.s32.totalorder %s157, %s160
      %p169 = scmp.eq.s32.totalorder %s21, 1
      %p170 = por %p168, %p169
      %p171 = scmp.ne.s32.totalorder %s160, %s161
      %p172 = scmp.eq.s32.totalorder %s21, 0
      %p173 = por %p171, %p172
      %p174 = scmp.ne.s32.totalorder %s160, %s161
      %p175 = scmp.eq.s32.totalorder %s22, 1
      %p176 = por %p174, %p175
      %p178 = scmp.ne.s32.totalorder %s161, %s177
      %p179 = scmp.eq.s32.totalorder %s22, 0
      %p180 = por %p178, %p179
      %p181 = scmp.le.s32.totalorder 1, %s16
      %p182 = scmp.lt.s32.totalorder %s16, 3
      %p183 = pnand %p181, %p182
      %p184 = pneg %p183
      // Predicated region
      $region9: #{seqquery_multi.1} parent=5 // pred_check
        _
      $region10: #{seqquery_multi.1} parent=5 // pred_check_branch
        %186 = sbr.rel (%p183) target = $region12
      $region11: #{seqquery_multi.1} parent=5 // pred_region
        %s187 = ssub.s32 %s16, 1
        // Predicated region
        $region13: #{seqquery_multi.1} parent=11 // pred_check
          %p188 = pneg %p103
        $region14: #{seqquery_multi.1} parent=11 // pred_check_branch
          %190 = sbr.rel (%p188) target = $region16
        $region15: #{seqquery_multi.1} parent=11 // pred_region
          _
        $region16: #{seqquery_multi.1} parent=11 // pred_fallthru
          _
        // Predicated region
        $region17: #{seqquery_multi.1} parent=11 // pred_check
          %p191 = pneg %p124
        $region18: #{seqquery_multi.1} parent=11 // pred_check_branch
          %193 = sbr.rel (%p191) target = $region20
        $region19: #{seqquery_multi.1} parent=11 // pred_region
          _
        $region20: #{seqquery_multi.1} parent=11 // pred_fallthru
          _
        // Predicated region
        $region21: #{seqquery_multi.1} parent=11 // pred_check
          %p194 = pneg %p145
        $region22: #{seqquery_multi.1} parent=11 // pred_check_branch
          %196 = sbr.rel (%p194) target = $region24
        $region23: #{seqquery_multi.1} parent=11 // pred_region
          _
        $region24: #{seqquery_multi.1} parent=11 // pred_fallthru
          _
      $region12: #{seqquery_multi.1} parent=5 // pred_fallthru
        _
      %p197 = scmp.lt.s32.totalorder %s16, 2
      // Predicated region
      $region25: #{seqquery_multi.1} parent=5 // pred_check
        %p198 = pneg %p197
      $region26: #{seqquery_multi.1} parent=5 // pred_check_branch
        %200 = sbr.rel (%p198) target = $region28
      $region27: #{seqquery_multi.1} parent=5 // pred_region
        // Predicated region
        $region29: #{seqquery_multi.1} parent=27 // pred_check
          %p201 = pneg %p50
        $region30: #{seqquery_multi.1} parent=27 // pred_check_branch
          %203 = sbr.rel (%p201) target = $region32
        $region31: #{seqquery_multi.1} parent=27 // pred_region
          %p204 = scmp.lt.s32.totalorder %s23, 1
          %s205 = scalar_select %p204, %s23, 1
          %p206 = scmp.lt.s32.totalorder %s24, 0
          %s207 = scalar_select %p206, %s24, 0
          %s208 = sadd.s32 %s207, %s205
          %s209 = smul.addr %s208, 8
          %s210 = scalar_lea.vmem %s0, %s209
        $region32: #{seqquery_multi.1} parent=27 // pred_fallthru
          _
        // Predicated region
        $region33: #{seqquery_multi.1} parent=27 // pred_check
          %p211 = pneg %p76
        $region34: #{seqquery_multi.1} parent=27 // pred_check_branch
          %213 = sbr.rel (%p211) target = $region36
        $region35: #{seqquery_multi.1} parent=27 // pred_region
          %p214 = scmp.lt.s32.totalorder %s23, 1
          %s215 = scalar_select %p214, %s23, 1
          %s216 = scalar_lea.vmem %s1, %s215
        $region36: #{seqquery_multi.1} parent=27 // pred_fallthru
          _
      $region28: #{seqquery_multi.1} parent=5 // pred_fallthru
        _
      %p217 = scmp.le.s32.totalorder 1, %s16
      %p218 = scmp.lt.s32.totalorder %s16, 3
      %p219 = pnand %p217, %p218
      %p220 = pneg %p219
      // Predicated region
      $region37: #{seqquery_multi.1} parent=5 // pred_check
        _
      $region38: #{seqquery_multi.1} parent=5 // pred_check_branch
        %222 = sbr.rel (%p219) target = $region40
      $region39: #{seqquery_multi.1} parent=5 // pred_region
        %s223 = ssub.s32 %s16, 1
        %p224 = scmp.lt.s32.totalorder %s25, 1
        %s225 = scalar_select %p224, %s25, 1
        %p226 = scmp.lt.s32.totalorder %s26, 0
        %s227 = scalar_select %p226, %s26, 0
        %s228 = sadd.s32 %s227, %s225
        %s229 = smul.addr %s228, 8
        %s230 = scalar_lea.vmem %s0, %s229
        %p231 = pneg %p56
        %p232 = pneg %p53
        %p233 = scmp.lt.s32.totalorder %s25, 1
        %s234 = scalar_select %p233, %s25, 1
        %s235 = scalar_lea.vmem %s1, %s234
        %p236 = pneg %p82
        %p237 = pneg %p79
        %p238 = pneg %p103
        %p239 = pneg %p100
        %p240 = pneg %p124
        %p241 = pneg %p121
        %p242 = pneg %p145
        %p243 = pneg %p142
        %p244 = pneg %p173
        %p245 = pneg %p170
        %s246 = sand.u32 %s160, 1
        %s247 = scalar_lea.sflag [#allocation4], %s246
        %s248 = sand.u32 %s160, 1
        %s249 = smul.addr %s248, 8
        %s250 = scalar_lea.vmem [#allocation3], %s249
        %p251 = scmp.lt.s32.totalorder %s25, 1
        %s252 = scalar_select %p251, %s25, 1
        %p253 = scmp.lt.s32.totalorder %s26, 0
        %s254 = scalar_select %p253, %s26, 0
        %s255 = sadd.s32 %s254, %s252
        %s256 = smul.addr %s255, 8
        %s257 = scalar_lea.vmem %s0, %s256
        %p258 = scmp.lt.s32.totalorder %s25, 1
        %s259 = scalar_select %p258, %s25, 1
        %s260 = scalar_lea.vmem %s1, %s259
        %v261 = vld [vmem:[%s257] sm:$0xff]
        %v262 = vld [vmem:[%s260] sm:$0x1]
        %v263 = vld [vmem:[%s2] sm:$0xff]
        %v264 = vld [vmem:[%s2 + $0x8] sm:$0xff]
        %v265 = vld [vmem:[%s2 + $0x10] sm:$0xff]
        %v266 = vld [vmem:[%s2 + $0x18] sm:$0xff]
        %v268 = vlaneseq
        %v269 = vshrl.u32 %v268, 7
        %v270 = vsub.s32 0, %v269
        %v271 = vrot.slane %v262, %v270
        %vm273 = vcmask 261120
        %v275 = vsel %vm273, %v261, 0
        %277 = vmatprep.subr.mxu0 0.0
        %278 = vmatpush1.msra.mxu0 %v263
        %279 = vmatprep.subr.mxu0 0.0
        %280 = vmatpush1.msra.mxu0 %v264
        %281 = vmatprep.subr.mxu0 0.0
        %282 = vmatpush1.msra.mxu0 %v265
        %283 = vmatprep.subr.mxu0 0.0
        %284 = vmatpush1.msra.mxu0 %v266
        %285 = vmatprep.subr.mxu0 0.0
        %286 = vmatpush1.msra.mxu0 0.0
        %287 = vmatprep.subr.mxu0 0.0
        %288 = vmatpush1.msra.mxu0 0.0
        %289 = vmatprep.subr.mxu0 0.0
        %290 = vmatpush1.msra.mxu0 0.0
        %291 = vmatprep.subr.mxu0 0.0
        %292 = vmatpush1.msra.mxu0 0.0
        %293 = vmatprep.subr.mxu0 0.0
        %294 = vmatpush1.msra.mxu0 0.0
        %295 = vmatprep.subr.mxu0 0.0
        %296 = vmatpush1.msra.mxu0 0.0
        %297 = vmatprep.subr.mxu0 0.0
        %298 = vmatpush1.msra.mxu0 0.0
        %299 = vmatprep.subr.mxu0 0.0
        %300 = vmatpush1.msra.mxu0 0.0
        %301 = vmatprep.subr.mxu0 0.0
        %302 = vmatpush1.msra.mxu0 0.0
        %303 = vmatprep.subr.mxu0 0.0
        %304 = vmatpush1.msra.mxu0 0.0
        %305 = vmatprep.subr.mxu0 0.0
        %306 = vmatpush1.msra.mxu0 0.0
        %307 = vmatprep.subr.mxu0 0.0
        %308 = vmatpush1.msra.mxu0 0.0
        %309 = vmatprep.subr.mxu0 0.0
        %310 = vmatpush1.msra.mxu0 0.0
        %311 = vmatprep.subr.mxu0 0.0
        %312 = vmatpush1.msra.mxu0 0.0
        %313 = vmatprep.subr.mxu0 0.0
        %314 = vmatpush1.msra.mxu0 0.0
        %315 = vmatprep.subr.mxu0 0.0
        %316 = vmatpush1.msra.mxu0 0.0
        %317 = vmatprep.subr.mxu0 0.0
        %318 = vmatpush1.msra.mxu0 0.0
        %319 = vmatprep.subr.mxu0 0.0
        %320 = vmatpush1.msra.mxu0 0.0
        %321 = vmatprep.subr.mxu0 0.0
        %322 = vmatpush1.msra.mxu0 0.0
        %323 = vmatprep.subr.mxu0 0.0
        %324 = vmatpush1.msra.mxu0 0.0
        %325 = vmatprep.subr.mxu0 0.0
        %326 = vmatpush1.msra.mxu0 0.0
        %327 = vmatprep.subr.mxu0 0.0
        %328 = vmatpush1.msra.mxu0 0.0
        %329 = vmatprep.subr.mxu0 0.0
        %330 = vmatpush1.msra.mxu0 0.0
        %331 = vmatprep.subr.mxu0 0.0
        %332 = vmatpush1.msra.mxu0 0.0
        %333 = vmatprep.subr.mxu0 0.0
        %334 = vmatpush1.msra.mxu0 0.0
        %335 = vmatprep.subr.mxu0 0.0
        %336 = vmatpush1.msra.mxu0 0.0
        %337 = vmatprep.subr.mxu0 0.0
        %338 = vmatpush1.msra.mxu0 0.0
        %339 = vmatprep.subr.mxu0 0.0
        %340 = vmatpush1.msra.mxu0 0.0
        %341 = vmatprep.mubr.f32.mxu0 0.0
        %342 = vmatmul.mubr.f32.gmra.mrb[0].mxu0 %v275
        %v343 = vpop.f32.mrb[0].mxu0
        %v344 = vadd.f32 %v271, %v343
        %v345 = vpop.f32.mrb[0].mxu0
        %346 = vdwg.mxu0
        %v347 = vxor.u32 %v344, 2147483648
        %v348 = vmul.f32 %v347, 1.442695
        %v349 = vpow.pop %v348
        %v350 = vadd.f32 %v349, 1.0
        %v351 = vrcp.pop %v350
        %v352 = vmul.f32 1.0, %v351
        %v353 = vld [vmem:[%s3] sm:$0x1]
        %v355 = vlaneseq
        %v356 = vshrl.u32 %v355, 7
        %v357 = vsub.s32 0, %v356
        %v358 = vrot.slane %v353, %v357
        %v360 = vmul.f32 %v352, %v358
        %v361 = vsel %vm273, %v360, 0.0
        %362 = vadd.xlane.f32.xlu0 %v361
        %v363 = vpop.xlane.xlu0 %362
        %v364 = vld [vmem:[#allocation2] sm:$0x1]
        %s365 = vtos %v364
        %v366 = vstv %s365
        %v367 = vadd.f32 %v363, %v366
        %v368 = vmul.f32 %v367, %v261
        %369 = vst.msk [vmem:[%s250] sm:$0xff] %vm273, %v368
        %s370 = sand.u32 %s160, 1
        %s371 = scalar_lea.sflag [#allocation4], %s370
        %s372 = sand.u32 %s160, 1
        %s373 = smul.addr %s372, 8
        %s374 = scalar_lea.vmem [#allocation3], %s373
        // Predicated region
        $region41: #{seqquery_multi.1} parent=39 // pred_check
          %p375 = pneg %p170
        $region42: #{seqquery_multi.1} parent=39 // pred_check_branch
          %377 = sbr.rel (%p375) target = $region44
        $region43: #{seqquery_multi.1} parent=39 // pred_region
          %s379 = ssub.s32 128, 128
          %380 = vsyncadd %s371, %s379
          %s381 = sadd.s32 %s26, %s25
          %s382 = smul.addr %s381, 128
          %s383 = scalar_lea.hbm %s5, %s382
          %s385 = sshll.u32 %s374, 4
          %s386 = int_to_ptr.vmem [resolvable:$true] %s385
          %388 = dma.vmem_to_hbm [thread:$0]  %s386, 128, %s383, %s371
        $region44: #{seqquery_multi.1} parent=39 // pred_fallthru
          _
      $region40: #{seqquery_multi.1} parent=5 // pred_fallthru
        _
      %p389 = scmp.le.s32.totalorder 2, %s16
      // Predicated region
      $region45: #{seqquery_multi.1} parent=5 // pred_check
        %p390 = pneg %p389
      $region46: #{seqquery_multi.1} parent=5 // pred_check_branch
        %392 = sbr.rel (%p390) target = $region48
      $region47: #{seqquery_multi.1} parent=5 // pred_region
        %s393 = ssub.s32 %s16, 2
        // Predicated region
        $region49: #{seqquery_multi.1} parent=47 // pred_check
          %p394 = pneg %p176
        $region50: #{seqquery_multi.1} parent=47 // pred_check_branch
          %396 = sbr.rel (%p394) target = $region52
        $region51: #{seqquery_multi.1} parent=47 // pred_region
          %s397 = sand.u32 %s161, 1
          %s398 = scalar_lea.sflag [#allocation4], %s397
          %s399 = sand.u32 %s161, 1
          %s400 = smul.addr %s399, 8
          %s401 = scalar_lea.vmem [#allocation3], %s400
          %402 = dma.done %s398, 128
        $region52: #{seqquery_multi.1} parent=47 // pred_fallthru
          _
      $region48: #{seqquery_multi.1} parent=5 // pred_fallthru
        _
    $region6: #{seqquery_multi.1} parent=1 // loop_footer
      %s20 = sadd.s32 1, %s16
    $region7: #{seqquery_multi.1} parent=1 // loop_footer_branch
      %15 = sbr.rel target = $region3
    $region8: #{seqquery_multi.1} parent=1 // loop_exit
      _
    %403 = vsyncpa [#allocation4], 1
    %s404 = scalar_lea.sflag [#allocation4], 1
    %405 = vsyncpa %s404, 1

</llo_original>
